<compile_context>
chip_gen: v6e
topology: v6e:2x2x1
jax: 0.10.0
libtpu: 0.0.40
codegen_flags: <defaults>
</compile_context>

<pallas_src>
import functools

import numpy as np

import jax
import jax.numpy as jnp
from jax.experimental import pallas as pl
from jax.experimental.pallas import tpu as pltpu


_MAX_TILE_ROWS = 16384
_FALLBACK_VMEM_BUDGET = 44 * 1024 * 1024   # safe default: fits v7x's 64 MiB/TC


def _round_up(x, m):
    return (x + m - 1) // m * m


def _num_split_parts(dtype):
    """Number of exact bf16 split terms so that sum(parts) == x bit-exactly."""
    if dtype == jnp.float32:
        return 3            # 24-bit mantissa -> 8 + 8 + <=8 bits
    if dtype == jnp.float16:
        return 2            # 11-bit mantissa -> 8 + <=3 bits
    if dtype == jnp.bfloat16:
        return 1            # already bf16
    # TODO(synk): non-float dtypes would need a copy-based kernel; NSOLT
    # activations are floating point, so this path is not implemented.
    raise NotImplementedError(f"unsupported dtype for channel separation: {dtype}")


def _group_size(c):
    """Pixels packed per reshaped row: keep AC width >= 128 lanes but G minimal
    so the selection matmul stays far below the HBM roofline (even on v5e)."""
    if c > 32:               # channel axis already fairly lane-dense
        return 8
    return 32 * max(1, -(-4 // (c - 1)))     # c=2 -> 128, c=3/4 -> 64, c>=5 -> 32


def _selection_matrix(c, g):
    """(g*c, g*(c-1)+g) exact 0/1 matrix.

    Columns [0, g*(c-1)) pick the AC channels (drop channel 0 of each group),
    the last g columns pick channel 0 of each group (DC).  0/1 is exactly
    representable in bf16, so products with the (exactly split) data are exact.
    """
    w_in, w_ac = g * c, g * (c - 1)
    s = np.zeros((w_in, w_ac + g), np.float32)
    for grp in range(g):
        for ch in range(1, c):
            s[grp * c + ch, grp * (c - 1) + ch - 1] = 1.0
        s[grp * c, w_ac + grp] = 1.0
    return jnp.asarray(s, dtype=jnp.bfloat16)


def _vmem_budget_bytes():
    """Generation-aware VMEM budget (review #4)."""
    try:
        cap = pltpu.get_tpu_info().vmem_capacity_bytes
        return min(int(cap * 0.7), 100 * 1024 * 1024)   # v5e/v6e ~89 MiB, v7x ~44 MiB
    except Exception:
        # Hardware query unavailable: fall back to a budget that fits every
        # supported generation (this only picks a constant, never a different
        # algorithm).
        return _FALLBACK_VMEM_BUDGET


def _pick_tile_rows(rows, w_in, w_ac, w_dc, itemsize, budget):
    """Largest row tile that fits the VMEM budget, with >= 2 grid steps."""
    if rows <= 8:
        return rows
    lanes = lambda w: _round_up(w, 128)
    # 2x double-buffered in/out blocks + generous allowance for in-kernel
    # f32/bf16 temporaries of the split + matmul accumulator.
    per_row = (2 * itemsize * (lanes(w_in) + lanes(w_ac) + lanes(w_dc))
               + 32 * lanes(w_in))
    tile = (budget - (2 << 20)) // per_row
    tile = max(8, min(tile, _MAX_TILE_ROWS))
    tile -= tile % 8
    half = _round_up(pl.cdiv(rows, 2), 8)   # >= 2 steps so v7x uses both TCs
    return max(8, min(tile, half))


def _sep_kernel(x_ref, s_ref, ac_ref, dc_ref, *, n_parts, w_ac):
    """Exact channel de-interleave via a 0/1 selection matmul on lane-dense blocks.

    x is decomposed into `n_parts` bf16 terms whose sum is EXACTLY x for
    normal-range floats; each MXU product is then an exact bf16 value times
    1.0 (or 0.0) with f32 accumulation, so this reproduces the pure-copy
    semantics bit-exactly.  (Non-finite inputs would propagate NaNs within
    their pixel group; this layer is pure data movement of finite activations.)
    """
    s = s_ref[...]
    rem = x_ref[...].astype(jnp.float32)
    acc = None
    for p in range(n_parts):
        part = rem.astype(jnp.bfloat16)
        y = jnp.dot(part, s, preferred_element_type=jnp.float32)
        acc = y if acc is None else acc + y
        if p + 1 < n_parts:
            rem = rem - part.astype(jnp.float32)
    ac_ref[...] = acc[:, :w_ac].astype(ac_ref.dtype)
    dc_ref[...] = acc[:, w_ac:].astype(dc_ref.dtype)


def _separate_lane_dense(x2, c, g):
    """x2: (rows, g*c) -> AC (rows, g*(c-1)), DC (rows, g); all lane-dense."""
    rows, w_in = x2.shape
    dt = x2.dtype
    w_ac, w_dc = g * (c - 1), g
    n_parts = _num_split_parts(dt)
    s = _selection_matrix(c, g)

    budget = _vmem_budget_bytes()
    tile = _pick_tile_rows(rows, w_in, w_ac, w_dc, dt.itemsize, budget)
    num_tiles = pl.cdiv(rows, tile)

    kernel = functools.partial(_sep_kernel, n_parts=n_parts, w_ac=w_ac)

    flops = 2 * rows * w_in * (w_ac + w_dc) * n_parts
    bytes_accessed = rows * (w_in + w_ac + w_dc) * dt.itemsize + s.size * 2

    ac2, dc2 = pl.pallas_call(
        kernel,
        out_shape=(
            jax.ShapeDtypeStruct((rows, w_ac), dt),
            jax.ShapeDtypeStruct((rows, w_dc), dt),
        ),
        grid=(num_tiles,),
        in_specs=[
            # Input block: full-width lane-dense rows (contiguous HBM + VMEM).
            pl.BlockSpec((tile, w_in), lambda i: (i, 0)),
            # Selection matrix: same block index every step -> fetched once.
            pl.BlockSpec((w_in, w_ac + w_dc), lambda i: (0, 0)),
        ],
        out_specs=(
            pl.BlockSpec((tile, w_ac), lambda i: (i, 0)),
            pl.BlockSpec((tile, w_dc), lambda i: (i, 0)),
        ),
        compiler_params=pltpu.CompilerParams(
            dimension_semantics=("parallel",),
            vmem_limit_bytes=budget,
        ),
        cost_estimate=pl.CostEstimate(
            flops=flops, transcendentals=0, bytes_accessed=bytes_accessed),
    )(x2, s)
    return ac2, dc2


def nsolt_channel_separation_2d(x):
    """x: (nSamples, nRows, nCols, nChsTotal) -> (AC, DC), like the PyTorch module."""
    if x.ndim != 4:
        raise ValueError("expected a 4-D input (nSamples, nRows, nCols, nChsTotal)")
    n, h, w, c = x.shape
    if c < 2:
        raise ValueError("nChsTotal must be >= 2")

    m = n * h * w
    g = _group_size(c)

    x2 = x.reshape(m, c)
    m_pad = _round_up(m, g)
    if m_pad != m:
        # Rare: pad a few pixel rows so the lane-dense (m/g, g*c) reblocking
        # applies; the padded rows are sliced off the outputs below.
        x2 = jnp.pad(x2, ((0, m_pad - m), (0, 0)))
    x2 = x2.reshape(m_pad // g, g * c)

    ac2, dc2 = _separate_lane_dense(x2, c, g)

    if m_pad != m:
        ac = ac2.reshape(m_pad, c - 1)[:m].reshape(n, h, w, c - 1)
        dc = dc2.reshape(m_pad)[:m].reshape(n, h, w)
    else:
        ac = ac2.reshape(n, h, w, c - 1)
        dc = dc2.reshape(n, h, w)
    return ac, dc


if __name__ == "__main__":
    # Small deterministic input: nSamples=2, nRows=16, nCols=16, nChsTotal=5.
    key = jax.random.PRNGKey(0)
    x = jax.random.normal(key, (2, 16, 16, 5), dtype=jnp.float32)

    ac, dc = nsolt_channel_separation_2d(x)
    jax.block_until_ready((ac, dc))

    # Reference semantics (plain JAX) — identical to the PyTorch forward.
    ac_ref = x[:, :, :, 1:]
    dc_ref = x[:, :, :, 0]
    assert ac.shape == (2, 16, 16, 4) and ac.dtype == x.dtype
    assert dc.shape == (2, 16, 16) and dc.dtype == x.dtype
    assert jnp.array_equal(ac, ac_ref), "AC mismatch"
    assert jnp.array_equal(dc, dc_ref), "DC mismatch"

    print("KERNEL_OK")
</pallas_src>

<mosaic_0001>
module attributes {stable_mosaic.version = 11 : i64} {
  func.func @_sep_kernel(%arg0: i32, %arg1: memref<8x160xf32, #tpu.memory_space<vmem>>, %arg2: memref<160x160xbf16, #tpu.memory_space<vmem>>, %arg3: memref<8x128xf32, #tpu.memory_space<vmem>>, %arg4: memref<8x32xf32, #tpu.memory_space<vmem>>) attributes {dimension_semantics = [#tpu.dimension_semantics<parallel>], iteration_bounds = array<i64: 2>, scalar_prefetch = 0 : i64, scratch_operands = 0 : i64, tpu.core_type = #tpu.core_type<tc>, window_params = [{transform_indices = @transform_0, window_bounds = array<i64: 8, 160>}, {pipeline_mode = #tpu.pipeline_mode<synchronous>, transform_indices = @transform_1, window_bounds = array<i64: 160, 160>}, {transform_indices = @transform_2, window_bounds = array<i64: 8, 128>}, {transform_indices = @transform_3, window_bounds = array<i64: 8, 32>}]} {
    %c0 = arith.constant 0 : index
    %c0_0 = arith.constant 0 : index
    %0 = vector.load %arg2[%c0, %c0_0] : memref<160x160xbf16, #tpu.memory_space<vmem>>, vector<160x160xbf16>
    %c0_1 = arith.constant 0 : index
    %c0_2 = arith.constant 0 : index
    %1 = vector.load %arg1[%c0_1, %c0_2] : memref<8x160xf32, #tpu.memory_space<vmem>>, vector<8x160xf32>
    %2 = arith.truncf %1 : vector<8x160xf32> to vector<8x160xbf16>
    %cst = arith.constant dense<0.000000e+00> : vector<8x160xf32>
    %3 = tpu.matmul %2, %0, %cst {dimension_numbers = #tpu.dot_dimension_numbers<[1], [0], [0], [1], [0, 0, 1, 1], [], []>} : vector<8x160xbf16>, vector<160x160xbf16>, vector<8x160xf32> -> vector<8x160xf32>
    %4 = arith.extf %2 : vector<8x160xbf16> to vector<8x160xf32>
    %5 = arith.subf %1, %4 : vector<8x160xf32>
    %6 = arith.truncf %5 : vector<8x160xf32> to vector<8x160xbf16>
    %cst_3 = arith.constant dense<0.000000e+00> : vector<8x160xf32>
    %7 = tpu.matmul %6, %0, %cst_3 {dimension_numbers = #tpu.dot_dimension_numbers<[1], [0], [0], [1], [0, 0, 1, 1], [], []>} : vector<8x160xbf16>, vector<160x160xbf16>, vector<8x160xf32> -> vector<8x160xf32>
    %8 = arith.addf %3, %7 : vector<8x160xf32>
    %9 = arith.extf %6 : vector<8x160xbf16> to vector<8x160xf32>
    %10 = arith.subf %5, %9 : vector<8x160xf32>
    %11 = arith.truncf %10 : vector<8x160xf32> to vector<8x160xbf16>
    %cst_4 = arith.constant dense<0.000000e+00> : vector<8x160xf32>
    %12 = tpu.matmul %11, %0, %cst_4 {dimension_numbers = #tpu.dot_dimension_numbers<[1], [0], [0], [1], [0, 0, 1, 1], [], []>} : vector<8x160xbf16>, vector<160x160xbf16>, vector<8x160xf32> -> vector<8x160xf32>
    %13 = arith.addf %8, %12 : vector<8x160xf32>
    %14 = vector.extract_strided_slice %13 {offsets = [0, 0], sizes = [8, 128], strides = [1, 1]} : vector<8x160xf32> to vector<8x128xf32>
    %c0_5 = arith.constant 0 : index
    %c0_6 = arith.constant 0 : index
    %15 = vector.load %arg3[%c0_5, %c0_6] : memref<8x128xf32, #tpu.memory_space<vmem>>, vector<8x128xf32>
    tpu.vector_store %arg3[%c0_5, %c0_6], %14 {strides = array<i32>} : memref<8x128xf32, #tpu.memory_space<vmem>>, vector<8x128xf32>,
    %16 = vector.extract_strided_slice %13 {offsets = [0, 128], sizes = [8, 32], strides = [1, 1]} : vector<8x160xf32> to vector<8x32xf32>
    %c0_7 = arith.constant 0 : index
    %c0_8 = arith.constant 0 : index
    %17 = vector.load %arg4[%c0_7, %c0_8] : memref<8x32xf32, #tpu.memory_space<vmem>>, vector<8x32xf32>
    tpu.vector_store %arg4[%c0_7, %c0_8], %16 {strides = array<i32>} : memref<8x32xf32, #tpu.memory_space<vmem>>, vector<8x32xf32>,
    return
  }
  func.func @transform_0(%arg0: i32) -> (i32, i32) {
    %c0_i32 = arith.constant 0 : i32
    %c0_i32_0 = arith.constant 0 : i32
    return %arg0, %c0_i32 : i32, i32
  }
  func.func @transform_1(%arg0: i32) -> (i32, i32) {
    %c0_i32 = arith.constant 0 : i32
    %c0_i32_0 = arith.constant 0 : i32
    %c0_i32_1 = arith.constant 0 : i32
    return %c0_i32, %c0_i32_0 : i32, i32
  }
  func.func @transform_2(%arg0: i32) -> (i32, i32) {
    %c0_i32 = arith.constant 0 : i32
    %c0_i32_0 = arith.constant 0 : i32
    return %arg0, %c0_i32 : i32, i32
  }
  func.func @transform_3(%arg0: i32) -> (i32, i32) {
    %c0_i32 = arith.constant 0 : i32
    %c0_i32_0 = arith.constant 0 : i32
    return %arg0, %c0_i32 : i32, i32
  }
}

</mosaic_0001>

<llo_original>
// kernel: tpu_custom_call.1
$region0: #{tpu_custom_call.1}
  #allocation0 [shape = 'u32[]', space=smem, size = 0x4, offset = 0x4, fixed_abs, tag = 'smem constant byte address 0x4 - core index']
  #allocation1 [shape = 'u32[144,128]{1,0:T(1,128)}', space=vmem, size = 0x12000, scoped, tag = 'internal scratch']
  %s0 = inlined_call_operand.hbm [shape: f32[16,160], index: 0, kind: input, shape index: {}]
  %s1 = inlined_call_operand.hbm [shape: bf16[160,160], index: 1, kind: input, shape index: {}]
  %s2 = inlined_call_operand.hbm [shape: f32[16,128], index: 2, kind: output, shape index: {0}]
  %s3 = inlined_call_operand.hbm [shape: f32[16,32], index: 3, kind: output, shape index: {1}]
  %4 = xla_tuple %s2, %s3
  %s5 = sld [smem:[#allocation0]]
  $region57: #{tpu_custom_call.1} parent=0
    _
  %s7 = ssub.s32 1, %s5
  %s8 = scalar_select 0, %s7, %s5
  $region1: #{tpu_custom_call.1} parent=0
    #allocation2 [shape = 'u8[16384]{0}', space=vmem, size = 0x4000, scoped, tag = 'input window, operand 0']
    #allocation3 [shape = 's32[2]{0}', space=sflag, size = 0x8, scoped, tag = 'scoped memory for tpu_custom_call.1']
    #allocation4 [shape = 's32[2]{0}', space=sflag, size = 0x8, scoped, tag = 'scoped memory for tpu_custom_call.1']
    #allocation5 [shape = 'u8[81920]{0}', space=vmem, size = 0x14000, scoped, tag = 'input window, operand 1, single buffered']
    #allocation6 [shape = 's32[1]{0}', space=sflag, size = 0x4, scoped, tag = 'scoped memory for tpu_custom_call.1']
    #allocation7 [shape = 'u8[8192]{0}', space=vmem, size = 0x2000, scoped, tag = 'output window, operand 0']
    #allocation8 [shape = 'u8[8192]{0}', space=vmem, size = 0x2000, scoped, tag = 'output window, operand 1']
    #allocation9 [shape = 's32[2]{0}', space=sflag, size = 0x8, scoped, tag = 'scoped memory for tpu_custom_call.1']
    %9 = vsyncpa [#allocation3], 0
    %s10 = scalar_lea.sflag [#allocation3], 1
    %11 = vsyncpa %s10, 0
    %12 = vsyncpa [#allocation6], 0
    %13 = vsyncpa [#allocation4], 0
    %s14 = scalar_lea.sflag [#allocation4], 1
    %15 = vsyncpa %s14, 0
    %16 = vsyncpa [#allocation9], 0
    %s17 = scalar_lea.sflag [#allocation9], 1
    %18 = vsyncpa %s17, 0
    loop: start=0, step=1, limit=4
    $region2: #{tpu_custom_call.1} parent=1 // loop_pre_header
      _
    $region3: #{tpu_custom_call.1} parent=1 // loop_header
      %s20 = sphi 0, %s24
      %p21 = scmp.ge.s32.totalorder %s20, 4
      %s30 = sphi 0, %s32
      %s33 = sphi 0, %s30
      %s34 = sphi 0, %s33
      %s50 = sphi 0, %s34
      %s54 = sphi 0, %s54
      %s56 = sphi 0, %s54
      %s57 = sphi 0, %s56
      %s71 = sphi 0, %s57
      %s77 = sphi 0, %s79
      %s80 = sphi 0, %s77
      %s81 = sphi 0, %s80
      %s97 = sphi 0, %s81
      %s103 = sphi 0, %s105
      %s106 = sphi 0, %s103
      %s107 = sphi 0, %s106
      %s123 = sphi 0, %s107
    $region4: #{tpu_custom_call.1} parent=1 // loop_header_branch
      %23 = sbr.rel (%p21) target = $region8
    $region5: #{tpu_custom_call.1} parent=1 // loop_body
      %s25 = ssub.s32 %s20, 1
      %s26 = ssub.s32 %s20, 2
      %s27 = sadd.s32 %s20, 1
      %s28 = ssub.s32 %s20, %s27
      %p29 = scmp.eq.s32.totalorder %s28, 0
      %s31 = sadd.s32 %s30, 1
      %s32 = scalar_select %p29, %s30, %s31
      %p35 = pneg %p29
      %p36 = scmp.eq.s32.totalorder %s20, 1
      %p37 = por %p35, %p36
      %p38 = scmp.ne.s32.totalorder %s30, %s33
      %p39 = scmp.eq.s32.totalorder %s20, 0
      %p40 = por %p38, %p39
      %p41 = scmp.ne.s32.totalorder %s30, %s33
      %p42 = scmp.eq.s32.totalorder %s25, 1
      %p43 = por %p41, %p42
      %p44 = scmp.ne.s32.totalorder %s33, %s34
      %p45 = scmp.eq.s32.totalorder %s25, 0
      %p46 = por %p44, %p45
      %p47 = scmp.ne.s32.totalorder %s33, %s34
      %p48 = scmp.eq.s32.totalorder %s26, 1
      %p49 = por %p47, %p48
      %p51 = scmp.ne.s32.totalorder %s34, %s50
      %p52 = scmp.eq.s32.totalorder %s26, 0
      %p53 = por %p51, %p52
      %s55 = sadd.s32 %s54, 1
      %p58 = scmp.eq.s32.totalorder %s20, 1
      %p59 = scmp.ne.s32.totalorder %s54, %s56
      %p60 = scmp.eq.s32.totalorder %s20, 0
      %p61 = por %p59, %p60
      %p62 = scmp.ne.s32.totalorder %s54, %s56
      %p63 = scmp.eq.s32.totalorder %s25, 1
      %p64 = por %p62, %p63
      %p65 = scmp.ne.s32.totalorder %s56, %s57
      %p66 = scmp.eq.s32.totalorder %s25, 0
      %p67 = por %p65, %p66
      %p68 = scmp.ne.s32.totalorder %s56, %s57
      %p69 = scmp.eq.s32.totalorder %s26, 1
      %p70 = por %p68, %p69
      %p72 = scmp.ne.s32.totalorder %s57, %s71
      %p73 = scmp.eq.s32.totalorder %s26, 0
      %p74 = por %p72, %p73
      %s75 = ssub.s32 %s20, %s27
      %p76 = scmp.eq.s32.totalorder %s75, 0
      %s78 = sadd.s32 %s77, 1
      %s79 = scalar_select %p76, %s77, %s78
      %p82 = pneg %p76
      %p83 = scmp.eq.s32.totalorder %s20, 1
      %p84 = por %p82, %p83
      %p85 = scmp.ne.s32.totalorder %s77, %s80
      %p86 = scmp.eq.s32.totalorder %s20, 0
      %p87 = por %p85, %p86
      %p88 = scmp.ne.s32.totalorder %s77, %s80
      %p89 = scmp.eq.s32.totalorder %s25, 1
      %p90 = por %p88, %p89
      %p91 = scmp.ne.s32.totalorder %s80, %s81
      %p92 = scmp.eq.s32.totalorder %s25, 0
      %p93 = por %p91, %p92
      %p94 = scmp.ne.s32.totalorder %s80, %s81
      %p95 = scmp.eq.s32.totalorder %s26, 1
      %p96 = por %p94, %p95
      %p98 = scmp.ne.s32.totalorder %s81, %s97
      %p99 = scmp.eq.s32.totalorder %s26, 0
      %p100 = por %p98, %p99
      %s101 = ssub.s32 %s20, %s27
      %p102 = scmp.eq.s32.totalorder %s101, 0
      %s104 = sadd.s32 %s103, 1
      %s105 = scalar_select %p102, %s103, %s104
      %p108 = pneg %p102
      %p109 = scmp.eq.s32.totalorder %s20, 1
      %p110 = por %p108, %p109
      %p111 = scmp.ne.s32.totalorder %s103, %s106
      %p112 = scmp.eq.s32.totalorder %s20, 0
      %p113 = por %p111, %p112
      %p114 = scmp.ne.s32.totalorder %s103, %s106
      %p115 = scmp.eq.s32.totalorder %s25, 1
      %p116 = por %p114, %p115
      %p117 = scmp.ne.s32.totalorder %s106, %s107
      %p118 = scmp.eq.s32.totalorder %s25, 0
      %p119 = por %p117, %p118
      %p120 = scmp.ne.s32.totalorder %s106, %s107
      %p121 = scmp.eq.s32.totalorder %s26, 1
      %p122 = por %p120, %p121
      %p124 = scmp.ne.s32.totalorder %s107, %s123
      %p125 = scmp.eq.s32.totalorder %s26, 0
      %p126 = por %p124, %p125
      %p127 = scmp.le.s32.totalorder 1, %s20
      %p128 = scmp.lt.s32.totalorder %s20, 3
      %p129 = pnand %p127, %p128
      %p130 = pneg %p129
      // Predicated region
      $region9: #{tpu_custom_call.1} parent=5 // pred_check
        _
      $region10: #{tpu_custom_call.1} parent=5 // pred_check_branch
        %132 = sbr.rel (%p129) target = $region12
      $region11: #{tpu_custom_call.1} parent=5 // pred_region
        %s133 = ssub.s32 %s20, 1
        // Predicated region
        $region13: #{tpu_custom_call.1} parent=11 // pred_check
          %p134 = pneg %p67
        $region14: #{tpu_custom_call.1} parent=11 // pred_check_branch
          %136 = sbr.rel (%p134) target = $region16
        $region15: #{tpu_custom_call.1} parent=11 // pred_region
          %s138 = ssub.s32 2560, 2560
          %139 = vsyncadd [#allocation6], %s138
          %s140 = sshll.u32 [#allocation5], 4
          %s141 = int_to_ptr.vmem [resolvable:$true] %s140
          %146 = dma.hbm_to_vmem [thread:$0]  %s1, 2560, %s141, [#allocation6], 128, 128, 8
        $region16: #{tpu_custom_call.1} parent=11 // pred_fallthru
          _
      $region12: #{tpu_custom_call.1} parent=5 // pred_fallthru
        _
      %p147 = scmp.lt.s32.totalorder %s20, 2
      // Predicated region
      $region17: #{tpu_custom_call.1} parent=5 // pred_check
        %p148 = pneg %p147
      $region18: #{tpu_custom_call.1} parent=5 // pred_check_branch
        %150 = sbr.rel (%p148) target = $region20
      $region19: #{tpu_custom_call.1} parent=5 // pred_region
        // Predicated region
        $region21: #{tpu_custom_call.1} parent=19 // pred_check
          %p151 = pneg %p40
        $region22: #{tpu_custom_call.1} parent=19 // pred_check_branch
          %153 = sbr.rel (%p151) target = $region24
        $region23: #{tpu_custom_call.1} parent=19 // pred_region
          %s154 = sand.u32 %s30, 1
          %s155 = scalar_lea.sflag [#allocation3], %s154
          %s156 = sand.u32 %s30, 1
          %s157 = smul.addr %s156, 16
          %s158 = scalar_lea.vmem [#allocation2], %s157
          %s160 = ssub.s32 256, 256
          %161 = vsyncadd %s155, %s160
          %s162 = smul.addr %s20, 2
          %s163 = smul.addr %s162, 128
          %s164 = scalar_lea.hbm %s0, %s163
          %s166 = sshll.u32 %s158, 4
          %s167 = int_to_ptr.vmem [resolvable:$true] %s166
          %169 = dma.hbm_to_vmem [thread:$0]  %s164, 256, %s167, %s155
        $region24: #{tpu_custom_call.1} parent=19 // pred_fallthru
          _
      $region20: #{tpu_custom_call.1} parent=5 // pred_fallthru
        _
      %p170 = scmp.le.s32.totalorder 1, %s20
      %p171 = scmp.lt.s32.totalorder %s20, 3
      %p172 = pnand %p170, %p171
      %p173 = pneg %p172
      // Predicated region
      $region25: #{tpu_custom_call.1} parent=5 // pred_check
        _
      $region26: #{tpu_custom_call.1} parent=5 // pred_check_branch
        %175 = sbr.rel (%p172) target = $region28
      $region27: #{tpu_custom_call.1} parent=5 // pred_region
        %s176 = ssub.s32 %s20, 1
        %s177 = sand.u32 %s33, 1
        %s178 = scalar_lea.sflag [#allocation3], %s177
        %s179 = sand.u32 %s33, 1
        %s180 = smul.addr %s179, 16
        %s181 = scalar_lea.vmem [#allocation2], %s180
        // Predicated region
        $region29: #{tpu_custom_call.1} parent=27 // pred_check
          %p182 = pneg %p46
        $region30: #{tpu_custom_call.1} parent=27 // pred_check_branch
          %184 = sbr.rel (%p182) target = $region32
        $region31: #{tpu_custom_call.1} parent=27 // pred_region
          %185 = dma.done %s178, 256
        $region32: #{tpu_custom_call.1} parent=27 // pred_fallthru
          _
        // Predicated region
        $region33: #{tpu_custom_call.1} parent=27 // pred_check
          %p186 = pneg %p67
        $region34: #{tpu_custom_call.1} parent=27 // pred_check_branch
          %188 = sbr.rel (%p186) target = $region36
        $region35: #{tpu_custom_call.1} parent=27 // pred_region
          %189 = dma.done [#allocation6], 2560
        $region36: #{tpu_custom_call.1} parent=27 // pred_fallthru
          _
        %s190 = sand.u32 %s33, 1
        %s191 = scalar_lea.sflag [#allocation3], %s190
        %s192 = sand.u32 %s33, 1
        %s193 = smul.addr %s192, 16
        %s194 = scalar_lea.vmem [#allocation2], %s193
        %p195 = pneg %p46
        %p196 = pneg %p43
        %p197 = pneg %p67
        %p198 = pneg %p64
        %p199 = pneg %p93
        %p200 = pneg %p90
        %s201 = sand.u32 %s80, 1
        %s202 = scalar_lea.sflag [#allocation4], %s201
        %s203 = sand.u32 %s80, 1
        %s204 = smul.addr %s203, 8
        %s205 = scalar_lea.vmem [#allocation7], %s204
        %p206 = pneg %p119
        %p207 = pneg %p116
        %s208 = sand.u32 %s106, 1
        %s209 = scalar_lea.sflag [#allocation9], %s208
        %s210 = sand.u32 %s106, 1
        %s211 = smul.addr %s210, 8
        %s212 = scalar_lea.vmem [#allocation8], %s211
        %v214 = vld [vmem:[#allocation5] sm:$0xff]
        %v215 = vld [vmem:[#allocation5 + $0x8] sm:$0xff]
        %v216 = vld [vmem:[#allocation5 + $0x10] sm:$0xff]
        %v217 = vld [vmem:[#allocation5 + $0x18] sm:$0xff]
        %v218 = vld [vmem:[#allocation5 + $0x20] sm:$0xff]
        %v219 = vld [vmem:[#allocation5 + $0x28] sm:$0xff]
        %v220 = vld [vmem:[#allocation5 + $0x30] sm:$0xff]
        %v221 = vld [vmem:[#allocation5 + $0x38] sm:$0xff]
        %v222 = vld [vmem:[#allocation5 + $0x40] sm:$0xff]
        %v223 = vld [vmem:[#allocation5 + $0x48] sm:$0xff]
        %v224 = vld [vmem:[#allocation5 + $0x50] sm:$0xff]
        %v225 = vld [vmem:[#allocation5 + $0x58] sm:$0xff]
        %v226 = vld [vmem:[#allocation5 + $0x60] sm:$0xff]
        %v227 = vld [vmem:[#allocation5 + $0x68] sm:$0xff]
        %v228 = vld [vmem:[#allocation5 + $0x70] sm:$0xff]
        %v229 = vld [vmem:[#allocation5 + $0x78] sm:$0xff]
        %v230 = vld [vmem:[#allocation5 + $0x80] sm:$0xff]
        %v231 = vld [vmem:[#allocation5 + $0x88] sm:$0xff]
        %v232 = vld [vmem:[#allocation5 + $0x90] sm:$0xff]
        %v233 = vld [vmem:[#allocation5 + $0x98] sm:$0xff]
        %v234 = vld [vmem:[%s181] sm:$0xff]
        %v235 = vld [vmem:[%s181 + $0x8] sm:$0xff]
        %v236 = vpack.c.bf16 %v234, %v234
        %v237 = vpack.c.bf16 %v235, %v235
        %v238 = vunpack.c.l.bf16 %v236
        %v239 = vunpack.c.l.bf16 %v237
        %v240 = vsub.f32 %v234, %v238
        %v241 = vsub.f32 %v235, %v239
        %v242 = vpack.c.bf16 %v240, %v240
        %v243 = vpack.c.bf16 %v241, %v241
        %v264 = vunpack.c.l.b16 %v214
        %v265 = vunpack.c.h.b16 %v214
        %v266 = vunpack.c.l.b16 %v215
        %v267 = vunpack.c.h.b16 %v215
        %v268 = vunpack.c.l.b16 %v216
        %v269 = vunpack.c.h.b16 %v216
        %v270 = vunpack.c.l.b16 %v217
        %v271 = vunpack.c.h.b16 %v217
        %v272 = vunpack.c.l.b16 %v218
        %v273 = vunpack.c.h.b16 %v218
        %v274 = vunpack.c.l.b16 %v219
        %v275 = vunpack.c.h.b16 %v219
        %v276 = vunpack.c.l.b16 %v220
        %v277 = vunpack.c.h.b16 %v220
        %v278 = vunpack.c.l.b16 %v221
        %v279 = vunpack.c.h.b16 %v221
        %v280 = vunpack.c.l.b16 %v222
        %v281 = vunpack.c.h.b16 %v222
        %v282 = vunpack.c.l.b16 %v223
        %v283 = vunpack.c.h.b16 %v223
        %v284 = vunpack.c.l.b16 %v224
        %v285 = vunpack.c.h.b16 %v224
        %v286 = vunpack.c.l.b16 %v225
        %v287 = vunpack.c.h.b16 %v225
        %v288 = vunpack.c.l.b16 %v226
        %v289 = vunpack.c.h.b16 %v226
        %v290 = vunpack.c.l.b16 %v227
        %v291 = vunpack.c.h.b16 %v227
        %v292 = vunpack.c.l.b16 %v228
        %v293 = vunpack.c.h.b16 %v228
        %v294 = vunpack.c.l.b16 %v229
        %v295 = vunpack.c.h.b16 %v229
        %v296 = vunpack.c.l.b16 %v230
        %v297 = vunpack.c.h.b16 %v230
        %v298 = vunpack.c.l.b16 %v231
        %v299 = vunpack.c.h.b16 %v231
        %v300 = vunpack.c.l.b16 %v232
        %v301 = vunpack.c.h.b16 %v232
        %v302 = vunpack.c.l.b16 %v233
        %v303 = vunpack.c.h.b16 %v233
        %v304 = vpack.c.b16 %v266, %v264
        %v305 = vpack.c.b16 %v267, %v265
        %v306 = vpack.c.b16 %v270, %v268
        %v307 = vpack.c.b16 %v271, %v269
        %v308 = vpack.c.b16 %v274, %v272
        %v309 = vpack.c.b16 %v275, %v273
        %v310 = vpack.c.b16 %v278, %v276
        %v311 = vpack.c.b16 %v279, %v277
        %v312 = vpack.c.b16 %v282, %v280
        %v313 = vpack.c.b16 %v283, %v281
        %v314 = vpack.c.b16 %v286, %v284
        %v315 = vpack.c.b16 %v287, %v285
        %v316 = vpack.c.b16 %v290, %v288
        %v317 = vpack.c.b16 %v291, %v289
        %v318 = vpack.c.b16 %v294, %v292
        %v319 = vpack.c.b16 %v295, %v293
        %v320 = vpack.c.b16 %v298, %v296
        %v321 = vpack.c.b16 %v299, %v297
        %v322 = vpack.c.b16 %v302, %v300
        %v323 = vpack.c.b16 %v303, %v301
        %vm344 = vcmask 261120
        %v346 = vsel %vm344, %v243, 0
        %348 = vmatprep.subr.bf16.mxu0 %v319
        %349 = vmatpush1.bf16.msra.mxu0 %v318
        %350 = vmatprep.subr.bf16.mxu0 %v317
        %351 = vmatpush1.bf16.msra.mxu0 %v316
        %352 = vmatprep.subr.bf16.mxu0 %v315
        %353 = vmatpush1.bf16.msra.mxu0 %v314
        %354 = vmatprep.subr.bf16.mxu0 %v313
        %355 = vmatpush1.bf16.msra.mxu0 %v312
        %356 = vmatprep.subr.bf16.mxu0 %v311
        %357 = vmatpush1.bf16.msra.mxu0 %v310
        %358 = vmatprep.subr.bf16.mxu0 %v309
        %359 = vmatpush1.bf16.msra.mxu0 %v308
        %360 = vmatprep.subr.bf16.mxu0 %v307
        %361 = vmatpush1.bf16.msra.mxu0 %v306
        %362 = vmatprep.subr.bf16.mxu0 %v305
        %363 = vmatpush1.bf16.msra.mxu0 %v304
        %364 = vmatprep.subr.bf16.mxu0 0
        %365 = vmatpush2.bf16.msra.mxu0 0
        %366 = vmatprep.subr.bf16.mxu0 0
        %367 = vmatpush2.bf16.msra.mxu0 0
        %368 = vmatprep.subr.bf16.mxu0 0
        %369 = vmatpush2.bf16.msra.mxu0 0
        %370 = vmatprep.subr.bf16.mxu0 0
        %371 = vmatpush2.bf16.msra.mxu0 0
        %372 = vmatprep.subr.bf16.mxu0 0
        %373 = vmatpush2.bf16.msra.mxu0 0
        %374 = vmatprep.subr.bf16.mxu0 0
        %375 = vmatpush2.bf16.msra.mxu0 0
        %376 = vmatprep.subr.bf16.mxu0 %v323
        %377 = vmatpush2.bf16.msra.mxu0 %v322
        %378 = vmatprep.subr.bf16.mxu0 %v321
        %379 = vmatpush2.bf16.msra.mxu0 %v320
        %380 = vmatprep.mubr.bf16.mxu0 %v346
        %381 = vmatmul.mubr.bf16.gmra.mxu0 %v242
        %v382 = vpop.f32.mrf.mxu0
        %v383 = vadd.f32 0.0, %v382
        %v384 = vpop.f32.mrf.mxu0
        %v385 = vadd.f32 0.0, %v384
        %v386 = vpop.f32.mrf.mxu0
        %v387 = vpop.f32.mrf.mxu0
        %388 = vdwg.mxu0
        %v390 = vsel %vm344, %v237, 0
        %392 = vmatprep.subr.bf16.mxu0 %v319
        %393 = vmatpush1.bf16.msra.mxu0 %v318
        %394 = vmatprep.subr.bf16.mxu0 %v317
        %395 = vmatpush1.bf16.msra.mxu0 %v316
        %396 = vmatprep.subr.bf16.mxu0 %v315
        %397 = vmatpush1.bf16.msra.mxu0 %v314
        %398 = vmatprep.subr.bf16.mxu0 %v313
        %399 = vmatpush1.bf16.msra.mxu0 %v312
        %400 = vmatprep.subr.bf16.mxu0 %v311
        %401 = vmatpush1.bf16.msra.mxu0 %v310
        %402 = vmatprep.subr.bf16.mxu0 %v309
        %403 = vmatpush1.bf16.msra.mxu0 %v308
        %404 = vmatprep.subr.bf16.mxu0 %v307
        %405 = vmatpush1.bf16.msra.mxu0 %v306
        %406 = vmatprep.subr.bf16.mxu0 %v305
        %407 = vmatpush1.bf16.msra.mxu0 %v304
        %408 = vmatprep.subr.bf16.mxu0 0
        %409 = vmatpush2.bf16.msra.mxu0 0
        %410 = vmatprep.subr.bf16.mxu0 0
        %411 = vmatpush2.bf16.msra.mxu0 0
        %412 = vmatprep.subr.bf16.mxu0 0
        %413 = vmatpush2.bf16.msra.mxu0 0
        %414 = vmatprep.subr.bf16.mxu0 0
        %415 = vmatpush2.bf16.msra.mxu0 0
        %416 = vmatprep.subr.bf16.mxu0 0
        %417 = vmatpush2.bf16.msra.mxu0 0
        %418 = vmatprep.subr.bf16.mxu0 0
        %419 = vmatpush2.bf16.msra.mxu0 0
        %420 = vmatprep.subr.bf16.mxu0 %v323
        %421 = vmatpush2.bf16.msra.mxu0 %v322
        %422 = vmatprep.subr.bf16.mxu0 %v321
        %423 = vmatpush2.bf16.msra.mxu0 %v320
        %424 = vmatprep.mubr.bf16.mxu0 %v390
        %425 = vmatmul.mubr.bf16.gmra.mxu0 %v236
        %v426 = vpop.f32.mrf.mxu0
        %v427 = vadd.f32 %v383, %v426
        %v428 = vpop.f32.mrf.mxu0
        %v429 = vadd.f32 %v385, %v428
        %v430 = vpop.f32.mrf.mxu0
        %v431 = vpop.f32.mrf.mxu0
        %432 = vdwg.mxu0
        %v433 = vunpack.c.l.bf16 %v242
        %v434 = vunpack.c.l.bf16 %v243
        %v435 = vsub.f32 %v240, %v433
        %v436 = vsub.f32 %v241, %v434
        %v437 = vpack.c.bf16 %v435, %v435
        %v438 = vpack.c.bf16 %v436, %v436
        %v440 = vsel %vm344, %v438, 0
        %442 = vmatprep.subr.bf16.mxu0 %v319
        %443 = vmatpush1.bf16.msra.mxu0 %v318
        %444 = vmatprep.subr.bf16.mxu0 %v317
        %445 = vmatpush1.bf16.msra.mxu0 %v316
        %446 = vmatprep.subr.bf16.mxu0 %v315
        %447 = vmatpush1.bf16.msra.mxu0 %v314
        %448 = vmatprep.subr.bf16.mxu0 %v313
        %449 = vmatpush1.bf16.msra.mxu0 %v312
        %450 = vmatprep.subr.bf16.mxu0 %v311
        %451 = vmatpush1.bf16.msra.mxu0 %v310
        %452 = vmatprep.subr.bf16.mxu0 %v309
        %453 = vmatpush1.bf16.msra.mxu0 %v308
        %454 = vmatprep.subr.bf16.mxu0 %v307
        %455 = vmatpush1.bf16.msra.mxu0 %v306
        %456 = vmatprep.subr.bf16.mxu0 %v305
        %457 = vmatpush1.bf16.msra.mxu0 %v304
        %458 = vmatprep.subr.bf16.mxu0 0
        %459 = vmatpush2.bf16.msra.mxu0 0
        %460 = vmatprep.subr.bf16.mxu0 0
        %461 = vmatpush2.bf16.msra.mxu0 0
        %462 = vmatprep.subr.bf16.mxu0 0
        %463 = vmatpush2.bf16.msra.mxu0 0
        %464 = vmatprep.subr.bf16.mxu0 0
        %465 = vmatpush2.bf16.msra.mxu0 0
        %466 = vmatprep.subr.bf16.mxu0 0
        %467 = vmatpush2.bf16.msra.mxu0 0
        %468 = vmatprep.subr.bf16.mxu0 0
        %469 = vmatpush2.bf16.msra.mxu0 0
        %470 = vmatprep.subr.bf16.mxu0 %v323
        %471 = vmatpush2.bf16.msra.mxu0 %v322
        %472 = vmatprep.subr.bf16.mxu0 %v321
        %473 = vmatpush2.bf16.msra.mxu0 %v320
        %474 = vmatprep.mubr.bf16.mxu0 %v440
        %475 = vmatmul.mubr.bf16.gmra.mxu0 %v437
        %v476 = vpop.f32.mrf.mxu0
        %v477 = vadd.f32 0.0, %v476
        %v478 = vpop.f32.mrf.mxu0
        %v479 = vadd.f32 0.0, %v478
        %v480 = vpop.f32.mrf.mxu0
        %v481 = vpop.f32.mrf.mxu0
        %482 = vdwg.mxu0
        %v483 = vadd.f32 %v427, %v477
        %v484 = vadd.f32 %v429, %v479
        %485 = vst [vmem:[%s205] sm:$0xff] %v483
        %486 = vst.msk [vmem:[%s212] sm:$0xff] %vm344, %v484
        %s487 = sand.u32 %s80, 1
        %s488 = scalar_lea.sflag [#allocation4], %s487
        %s489 = sand.u32 %s80, 1
        %s490 = smul.addr %s489, 8
        %s491 = scalar_lea.vmem [#allocation7], %s490
        %s492 = sand.u32 %s106, 1
        %s493 = scalar_lea.sflag [#allocation9], %s492
        %s494 = sand.u32 %s106, 1
        %s495 = smul.addr %s494, 8
        %s496 = scalar_lea.vmem [#allocation8], %s495
        // Predicated region
        $region37: #{tpu_custom_call.1} parent=27 // pred_check
          %p497 = pneg %p90
        $region38: #{tpu_custom_call.1} parent=27 // pred_check_branch
          %499 = sbr.rel (%p497) target = $region40
        $region39: #{tpu_custom_call.1} parent=27 // pred_region
          %s501 = ssub.s32 128, 128
          %502 = vsyncadd %s488, %s501
          %s503 = smul.addr %s25, 128
          %s504 = scalar_lea.hbm %s2, %s503
          %s506 = sshll.u32 %s491, 4
          %s507 = int_to_ptr.vmem [resolvable:$true] %s506
          %509 = dma.vmem_to_hbm [thread:$0]  %s507, 128, %s504, %s488
        $region40: #{tpu_custom_call.1} parent=27 // pred_fallthru
          _
        // Predicated region
        $region41: #{tpu_custom_call.1} parent=27 // pred_check
          %p510 = pneg %p116
        $region42: #{tpu_custom_call.1} parent=27 // pred_check_branch
          %512 = sbr.rel (%p510) target = $region44
        $region43: #{tpu_custom_call.1} parent=27 // pred_region
          %s514 = ssub.s32 128, 128
          %515 = vsyncadd %s493, %s514
          %s516 = smul.addr %s25, 128
          %s517 = scalar_lea.hbm %s3, %s516
          %s519 = sshll.u32 %s496, 4
          %s520 = int_to_ptr.vmem [resolvable:$true] %s519
          %522 = dma.vmem_to_hbm [thread:$0]  %s520, 128, %s517, %s493
        $region44: #{tpu_custom_call.1} parent=27 // pred_fallthru
          _
      $region28: #{tpu_custom_call.1} parent=5 // pred_fallthru
        _
      %p523 = scmp.le.s32.totalorder 2, %s20
      // Predicated region
      $region45: #{tpu_custom_call.1} parent=5 // pred_check
        %p524 = pneg %p523
      $region46: #{tpu_custom_call.1} parent=5 // pred_check_branch
        %526 = sbr.rel (%p524) target = $region48
      $region47: #{tpu_custom_call.1} parent=5 // pred_region
        %s527 = ssub.s32 %s20, 2
        // Predicated region
        $region49: #{tpu_custom_call.1} parent=47 // pred_check
          %p528 = pneg %p96
        $region50: #{tpu_custom_call.1} parent=47 // pred_check_branch
          %530 = sbr.rel (%p528) target = $region52
        $region51: #{tpu_custom_call.1} parent=47 // pred_region
          %s531 = sand.u32 %s81, 1
          %s532 = scalar_lea.sflag [#allocation4], %s531
          %s533 = sand.u32 %s81, 1
          %s534 = smul.addr %s533, 8
          %s535 = scalar_lea.vmem [#allocation7], %s534
          %536 = dma.done %s532, 128
        $region52: #{tpu_custom_call.1} parent=47 // pred_fallthru
          _
        // Predicated region
        $region53: #{tpu_custom_call.1} parent=47 // pred_check
          %p537 = pneg %p122
        $region54: #{tpu_custom_call.1} parent=47 // pred_check_branch
          %539 = sbr.rel (%p537) target = $region56
        $region55: #{tpu_custom_call.1} parent=47 // pred_region
          %s540 = sand.u32 %s107, 1
          %s541 = scalar_lea.sflag [#allocation9], %s540
          %s542 = sand.u32 %s107, 1
          %s543 = smul.addr %s542, 8
          %s544 = scalar_lea.vmem [#allocation8], %s543
          %545 = dma.done %s541, 128
        $region56: #{tpu_custom_call.1} parent=47 // pred_fallthru
          _
      $region48: #{tpu_custom_call.1} parent=5 // pred_fallthru
        _
    $region6: #{tpu_custom_call.1} parent=1 // loop_footer
      %s24 = sadd.s32 1, %s20
    $region7: #{tpu_custom_call.1} parent=1 // loop_footer_branch
      %19 = sbr.rel target = $region3
    $region8: #{tpu_custom_call.1} parent=1 // loop_exit
      _
    %546 = vsyncpa [#allocation3], 1
    %s547 = scalar_lea.sflag [#allocation3], 1
    %548 = vsyncpa %s547, 1
    %549 = vsyncpa [#allocation6], 1
    %550 = vsyncpa [#allocation4], 1
    %s551 = scalar_lea.sflag [#allocation4], 1
    %552 = vsyncpa %s551, 1
    %553 = vsyncpa [#allocation9], 1
    %s554 = scalar_lea.sflag [#allocation9], 1
    %555 = vsyncpa %s554, 1

</llo_original>
